<compile_context>
chip_gen: v6e
topology: v6e:2x2x1
jax: 0.10.0
libtpu: 0.0.40
codegen_flags: <defaults>
</compile_context>

<pallas_src>
import jax
import jax.numpy as jnp
from jax import lax
from jax.experimental import pallas as pl
from jax.experimental.pallas import tpu as pltpu

NUM_STATS = 4                 # stand-in for df_SeasonDefense_NormalizedZ.shape[1]
IN_W = 5 * NUM_STATS + 4      # input width so the flatten in forward() works out
BATCH = 2
SUBLANE = 8                   # f32 sublane count of a vreg tile

# Width bookkeeping through the net (VALID convs, MaxPool2d((1,2), stride=2)).
W1 = IN_W - NUM_STATS + 1     # after conv1 (kernel (1, S))            -> 21
W2 = (W1 - 2) // 2 + 1        # after pool1 (floor mode)               -> 10
W3 = W2 - 1                   # after conv2 (kernel (1, 2))            -> 9
W4 = (W3 - 2) // 2 + 1        # after pool2 (== NUM_STATS)             -> 4
E1 = (W2 + 1) // 2            # number of even pool1 output positions  -> 5
assert W4 == NUM_STATS
assert W4 + 1 <= E1 and E1 + W4 <= W2


def _round_up(x, m):
    return (x + m - 1) // m * m


def sports_cnn_kernel(p1_ref, w1_ref, b1_ref, w2_ref, b2_ref,
                      wfc1_ref, bfc1_ref, wfc2_ref, bfc2_ref, out_ref):
    """Whole forward pass for the (sublane-padded) batch in one invocation.

    p1_ref   : [2*W2*N, S*2]  pre-permuted conv1 im2col patches (N % 8 == 0)
    w1_ref   : [S*2, 32]      b1_ref  : [1, 32]
    w2_ref   : [2*32, 64]     b2_ref  : [1, 64]
    wfc1_ref : [W4*64, 128]   bfc1_ref: [1, 128]
    wfc2_ref : [128, 128]     bfc2_ref: [1, 128]   (lane-padded from width 2)
    out_ref  : [N, 128]       (wrapper slices [:batch, :2])
    """
    n = out_ref.shape[0]      # padded batch -> all row offsets below are %8==0

    # conv1 (+bias+ReLU): one batched matmul for every batch element / width.
    h1 = jnp.dot(p1_ref[...], w1_ref[...], preferred_element_type=jnp.float32)
    h1 = jnp.maximum(h1 + b1_ref[...], 0.0)                   # [2*W2*N, 32]

    # pool1: rows were pre-ordered [even partners ; odd partners], so the
    # 2-wide/stride-2 max is a single VPU max of two contiguous halves.
    # Row j*N + b of p1 corresponds to pool1 output position pool_order[j]
    # (evens then odds), which makes the slices below contiguous.
    p1 = jnp.maximum(h1[:W2 * n, :], h1[W2 * n:, :])           # [W2*N, 32]

    # conv2 im2col, batched, from three contiguous row slices of p1.
    a = p1[:W4 * n, :]                      # pool1 positions 0, 2, ..., 2*W4-2
    c = p1[n:(W4 + 1) * n, :]               # pool1 positions 2, 4, ..., 2*W4
    b = p1[E1 * n:(E1 + W4) * n, :]         # pool1 positions 1, 3, ..., 2*W4-1
    patches2 = jnp.concatenate(
        [jnp.concatenate([a, b], axis=0),   # kernel tap k = 0
         jnp.concatenate([b, c], axis=0)],  # kernel tap k = 1
        axis=-1)                            # [2*W4*N, 64]

    h2 = jnp.dot(patches2, w2_ref[...], preferred_element_type=jnp.float32)
    h2 = jnp.maximum(h2 + b2_ref[...], 0.0)                    # [2*W4*N, 64]

    # pool2: rows are [even conv2 outputs ; odd conv2 outputs].
    p2 = jnp.maximum(h2[:W4 * n, :], h2[W4 * n:, :])           # [W4*N, 64]

    # fc1: flatten (width, channel) onto the lane axis and do ONE K=256 matmul.
    x_fc = jnp.concatenate([p2[w * n:(w + 1) * n, :] for w in range(W4)],
                           axis=-1)                            # [N, W4*64]
    h3 = jnp.dot(x_fc, wfc1_ref[...], preferred_element_type=jnp.float32)
    h3 = jnp.maximum(h3 + bfc1_ref[...], 0.0)                  # [N, 128]

    # fc2: lane-padded weights -> single unmasked lane-dense [N, 128] store.
    out_ref[...] = (jnp.dot(h3, wfc2_ref[...],
                            preferred_element_type=jnp.float32)
                    + bfc2_ref[...])


def sports_cnn_forward(x_nchw, params):
    """Glue: layout / weight reshuffling in plain JAX, compute in the kernel."""
    w1, b1, w2, b2, wfc1, bfc1, wfc2, bfc2 = params
    n, cin, h, w = x_nchw.shape
    assert cin == 2 and h == 1 and w == IN_W

    # Pad batch to a sublane multiple so every in-kernel row slice starts on
    # an (8,128) tile boundary (padded rows are computed and thrown away).
    n_pad = _round_up(max(n, SUBLANE), SUBLANE)

    # NCHW (H==1) -> [N, W, C]
    x_nwc = jnp.transpose(x_nchw[:, :, 0, :], (0, 2, 1))
    if n_pad != n:
        x_nwc = jnp.pad(x_nwc, ((0, n_pad - n), (0, 0), (0, 0)))

    # conv1 im2col in the wrapper: [N, W1, S*2], lane index = k*C_in + c.
    cols = jnp.concatenate([x_nwc[:, k:k + W1, :] for k in range(NUM_STATS)],
                           axis=-1)

    # Row permutation so every in-kernel pool / window is a contiguous slice:
    # pool1 outputs ordered evens-then-odds; rows = (even-partner block,
    # odd-partner block), width-major then batch.  Conv1 width 2*W2 (dropped
    # by the floor-mode pool) is never materialized.
    pool_order = list(range(0, W2, 2)) + list(range(1, W2, 2))
    even_w = [2 * i for i in pool_order]
    odd_w = [2 * i + 1 for i in pool_order]
    width_order = jnp.array(even_w + odd_w, dtype=jnp.int32)
    patches1 = jnp.transpose(cols[:, width_order, :], (1, 0, 2))
    patches1 = patches1.reshape(2 * W2 * n_pad, NUM_STATS * 2)   # [2*W2*N, 8]

    # conv weights flattened to match the patch lane order k*C_in + c.
    w1f = jnp.transpose(w1[:, :, 0, :], (2, 1, 0)).reshape(NUM_STATS * 2, 32)
    w2f = jnp.transpose(w2[:, :, 0, :], (2, 1, 0)).reshape(2 * 32, 64)
    # fc1: PyTorch flat index is c*W4 + w; kernel lane index is w*64 + c.
    wfc1f = jnp.transpose(wfc1.reshape(128, 64, W4), (2, 1, 0)).reshape(W4 * 64, 128)
    # fc2 padded to 128 output lanes so the kernel's final store is lane-dense.
    wfc2p = jnp.zeros((128, 128), jnp.float32).at[:, :2].set(wfc2.T)
    bfc2p = jnp.zeros((1, 128), jnp.float32).at[:, :2].set(bfc2[None, :])

    # Single grid point, everything resident in VMEM (KB-scale problem).
    # For large batch: add a grid over N with dimension_semantics=("parallel",)
    # and tile patches1/out by batch; weights stay full VMEM blocks.
    vmem = pl.BlockSpec(memory_space=pltpu.MemorySpace.VMEM)
    out_padded = pl.pallas_call(
        sports_cnn_kernel,
        out_shape=jax.ShapeDtypeStruct((n_pad, 128), jnp.float32),
        in_specs=[vmem] * 9,
        out_specs=vmem,
    )(patches1, w1f, b1.reshape(1, 32), w2f, b2.reshape(1, 64),
      wfc1f, bfc1.reshape(1, 128), wfc2p, bfc2p)
    return out_padded[:n, :2]


def sports_cnn_reference(x, params):
    """Pure-JAX reference mirroring the PyTorch forward (NCHW)."""
    w1, b1, w2, b2, wfc1, bfc1, wfc2, bfc2 = params
    dn = ('NCHW', 'OIHW', 'NCHW')
    hp = lax.Precision.HIGHEST
    y = lax.conv_general_dilated(x, w1, (1, 1), 'VALID',
                                 dimension_numbers=dn, precision=hp)
    y = jnp.maximum(y + b1[None, :, None, None], 0.0)
    y = lax.reduce_window(y, -jnp.inf, lax.max, (1, 1, 1, 2), (1, 1, 2, 2), 'VALID')
    y = lax.conv_general_dilated(y, w2, (1, 1), 'VALID',
                                 dimension_numbers=dn, precision=hp)
    y = jnp.maximum(y + b2[None, :, None, None], 0.0)
    y = lax.reduce_window(y, -jnp.inf, lax.max, (1, 1, 1, 2), (1, 1, 2, 2), 'VALID')
    y = y.reshape(-1, 64 * NUM_STATS)
    y = jnp.maximum(jnp.dot(y, wfc1.T, precision=hp) + bfc1, 0.0)
    return jnp.dot(y, wfc2.T, precision=hp) + bfc2


def init_params(key):
    ks = jax.random.split(key, 8)
    w1 = 0.1 * jax.random.normal(ks[0], (32, 2, 1, NUM_STATS), jnp.float32)
    b1 = 0.1 * jax.random.normal(ks[1], (32,), jnp.float32)
    w2 = 0.1 * jax.random.normal(ks[2], (64, 32, 1, 2), jnp.float32)
    b2 = 0.1 * jax.random.normal(ks[3], (64,), jnp.float32)
    wfc1 = 0.1 * jax.random.normal(ks[4], (128, 64 * NUM_STATS), jnp.float32)
    bfc1 = 0.1 * jax.random.normal(ks[5], (128,), jnp.float32)
    wfc2 = 0.1 * jax.random.normal(ks[6], (2, 128), jnp.float32)
    bfc2 = 0.1 * jax.random.normal(ks[7], (2,), jnp.float32)
    return (w1, b1, w2, b2, wfc1, bfc1, wfc2, bfc2)


if __name__ == "__main__":
    key = jax.random.PRNGKey(0)
    kx, kp = jax.random.split(key)
    x = jax.random.normal(kx, (BATCH, 2, 1, IN_W), jnp.float32)  # NCHW, like PyTorch
    params = init_params(kp)

    out = jax.block_until_ready(sports_cnn_forward(x, params))
    ref = jax.block_until_ready(sports_cnn_reference(x, params))

    assert out.shape == (BATCH, 2), out.shape
    assert jnp.allclose(out, ref, atol=1e-3, rtol=1e-3), (out, ref)
    print("KERNEL_OK")
</pallas_src>

<mosaic_0001>
module attributes {stable_mosaic.version = 11 : i64} {
  func.func @sports_cnn_kernel(%arg0: memref<160x8xf32, #tpu.memory_space<vmem>>, %arg1: memref<8x32xf32, #tpu.memory_space<vmem>>, %arg2: memref<1x32xf32, #tpu.memory_space<vmem>>, %arg3: memref<64x64xf32, #tpu.memory_space<vmem>>, %arg4: memref<1x64xf32, #tpu.memory_space<vmem>>, %arg5: memref<256x128xf32, #tpu.memory_space<vmem>>, %arg6: memref<1x128xf32, #tpu.memory_space<vmem>>, %arg7: memref<128x128xf32, #tpu.memory_space<vmem>>, %arg8: memref<1x128xf32, #tpu.memory_space<vmem>>, %arg9: memref<8x128xf32, #tpu.memory_space<vmem>>) attributes {dimension_semantics = [], scalar_prefetch = 0 : i64, scratch_operands = 0 : i64, tpu.core_type = #tpu.core_type<tc>} {
    %c0 = arith.constant 0 : index
    %c0_0 = arith.constant 0 : index
    %0 = vector.load %arg0[%c0, %c0_0] : memref<160x8xf32, #tpu.memory_space<vmem>>, vector<160x8xf32>
    %c0_1 = arith.constant 0 : index
    %c0_2 = arith.constant 0 : index
    %1 = vector.load %arg1[%c0_1, %c0_2] : memref<8x32xf32, #tpu.memory_space<vmem>>, vector<8x32xf32>
    %cst = arith.constant dense<0.000000e+00> : vector<160x32xf32>
    %2 = tpu.matmul %0, %1, %cst {dimension_numbers = #tpu.dot_dimension_numbers<[1], [0], [0], [1], [0, 0, 1, 1], [], []>} : vector<160x8xf32>, vector<8x32xf32>, vector<160x32xf32> -> vector<160x32xf32>
    %c0_3 = arith.constant 0 : index
    %c0_4 = arith.constant 0 : index
    %3 = vector.load %arg2[%c0_3, %c0_4] : memref<1x32xf32, #tpu.memory_space<vmem>>, vector<1x32xf32>
    %4 = vector.broadcast %3 : vector<1x32xf32> to vector<160x32xf32>
    %5 = arith.addf %2, %4 : vector<160x32xf32>
    %cst_5 = arith.constant 0.000000e+00 : f32
    %6 = vector.broadcast %cst_5 : f32 to vector<160x32xf32>
    %7 = arith.maximumf %5, %6 : vector<160x32xf32>
    %8 = vector.extract_strided_slice %7 {offsets = [0, 0], sizes = [80, 32], strides = [1, 1]} : vector<160x32xf32> to vector<80x32xf32>
    %9 = vector.extract_strided_slice %7 {offsets = [80, 0], sizes = [80, 32], strides = [1, 1]} : vector<160x32xf32> to vector<80x32xf32>
    %10 = arith.maximumf %8, %9 : vector<80x32xf32>
    %11 = vector.extract_strided_slice %10 {offsets = [0, 0], sizes = [32, 32], strides = [1, 1]} : vector<80x32xf32> to vector<32x32xf32>
    %12 = vector.extract_strided_slice %10 {offsets = [8, 0], sizes = [32, 32], strides = [1, 1]} : vector<80x32xf32> to vector<32x32xf32>
    %13 = vector.extract_strided_slice %10 {offsets = [40, 0], sizes = [32, 32], strides = [1, 1]} : vector<80x32xf32> to vector<32x32xf32>
    %14 = tpu.concatenate %11, %13 in 0 : vector<32x32xf32>, vector<32x32xf32> -> vector<64x32xf32>
    %15 = tpu.concatenate %13, %12 in 0 : vector<32x32xf32>, vector<32x32xf32> -> vector<64x32xf32>
    %16 = tpu.concatenate %14, %15 in 1 : vector<64x32xf32>, vector<64x32xf32> -> vector<64x64xf32>
    %c0_6 = arith.constant 0 : index
    %c0_7 = arith.constant 0 : index
    %17 = vector.load %arg3[%c0_6, %c0_7] : memref<64x64xf32, #tpu.memory_space<vmem>>, vector<64x64xf32>
    %cst_8 = arith.constant dense<0.000000e+00> : vector<64x64xf32>
    %18 = tpu.matmul %16, %17, %cst_8 {dimension_numbers = #tpu.dot_dimension_numbers<[1], [0], [0], [1], [0, 0, 1, 1], [], []>} : vector<64x64xf32>, vector<64x64xf32>, vector<64x64xf32> -> vector<64x64xf32>
    %c0_9 = arith.constant 0 : index
    %c0_10 = arith.constant 0 : index
    %19 = vector.load %arg4[%c0_9, %c0_10] : memref<1x64xf32, #tpu.memory_space<vmem>>, vector<1x64xf32>
    %20 = vector.broadcast %19 : vector<1x64xf32> to vector<64x64xf32>
    %21 = arith.addf %18, %20 : vector<64x64xf32>
    %cst_11 = arith.constant 0.000000e+00 : f32
    %22 = vector.broadcast %cst_11 : f32 to vector<64x64xf32>
    %23 = arith.maximumf %21, %22 : vector<64x64xf32>
    %24 = vector.extract_strided_slice %23 {offsets = [0, 0], sizes = [32, 64], strides = [1, 1]} : vector<64x64xf32> to vector<32x64xf32>
    %25 = vector.extract_strided_slice %23 {offsets = [32, 0], sizes = [32, 64], strides = [1, 1]} : vector<64x64xf32> to vector<32x64xf32>
    %26 = arith.maximumf %24, %25 : vector<32x64xf32>
    %27 = vector.extract_strided_slice %26 {offsets = [0, 0], sizes = [8, 64], strides = [1, 1]} : vector<32x64xf32> to vector<8x64xf32>
    %28 = vector.extract_strided_slice %26 {offsets = [8, 0], sizes = [8, 64], strides = [1, 1]} : vector<32x64xf32> to vector<8x64xf32>
    %29 = vector.extract_strided_slice %26 {offsets = [16, 0], sizes = [8, 64], strides = [1, 1]} : vector<32x64xf32> to vector<8x64xf32>
    %30 = vector.extract_strided_slice %26 {offsets = [24, 0], sizes = [8, 64], strides = [1, 1]} : vector<32x64xf32> to vector<8x64xf32>
    %31 = tpu.concatenate %27, %28, %29, %30 in 1 : vector<8x64xf32>, vector<8x64xf32>, vector<8x64xf32>, vector<8x64xf32> -> vector<8x256xf32>
    %c0_12 = arith.constant 0 : index
    %c0_13 = arith.constant 0 : index
    %32 = vector.load %arg5[%c0_12, %c0_13] : memref<256x128xf32, #tpu.memory_space<vmem>>, vector<256x128xf32>
    %cst_14 = arith.constant dense<0.000000e+00> : vector<8x128xf32>
    %33 = tpu.matmul %31, %32, %cst_14 {dimension_numbers = #tpu.dot_dimension_numbers<[1], [0], [0], [1], [0, 0, 1, 1], [], []>} : vector<8x256xf32>, vector<256x128xf32>, vector<8x128xf32> -> vector<8x128xf32>
    %c0_15 = arith.constant 0 : index
    %c0_16 = arith.constant 0 : index
    %34 = vector.load %arg6[%c0_15, %c0_16] : memref<1x128xf32, #tpu.memory_space<vmem>>, vector<1x128xf32>
    %35 = vector.broadcast %34 : vector<1x128xf32> to vector<8x128xf32>
    %36 = arith.addf %33, %35 : vector<8x128xf32>
    %cst_17 = arith.constant 0.000000e+00 : f32
    %37 = vector.broadcast %cst_17 : f32 to vector<8x128xf32>
    %38 = arith.maximumf %36, %37 : vector<8x128xf32>
    %c0_18 = arith.constant 0 : index
    %c0_19 = arith.constant 0 : index
    %39 = vector.load %arg7[%c0_18, %c0_19] : memref<128x128xf32, #tpu.memory_space<vmem>>, vector<128x128xf32>
    %cst_20 = arith.constant dense<0.000000e+00> : vector<8x128xf32>
    %40 = tpu.matmul %38, %39, %cst_20 {dimension_numbers = #tpu.dot_dimension_numbers<[1], [0], [0], [1], [0, 0, 1, 1], [], []>} : vector<8x128xf32>, vector<128x128xf32>, vector<8x128xf32> -> vector<8x128xf32>
    %c0_21 = arith.constant 0 : index
    %c0_22 = arith.constant 0 : index
    %41 = vector.load %arg8[%c0_21, %c0_22] : memref<1x128xf32, #tpu.memory_space<vmem>>, vector<1x128xf32>
    %42 = vector.broadcast %41 : vector<1x128xf32> to vector<8x128xf32>
    %43 = arith.addf %40, %42 : vector<8x128xf32>
    %c0_23 = arith.constant 0 : index
    %c0_24 = arith.constant 0 : index
    %44 = vector.load %arg9[%c0_23, %c0_24] : memref<8x128xf32, #tpu.memory_space<vmem>>, vector<8x128xf32>
    tpu.vector_store %arg9[%c0_23, %c0_24], %43 {strides = array<i32>} : memref<8x128xf32, #tpu.memory_space<vmem>>, vector<8x128xf32>,
    return
  }
}

</mosaic_0001>

<llo_original>
// kernel: tpu_custom_call.1
$region0: #{tpu_custom_call.1}
  #allocation0 [shape = 'u32[]', space=smem, size = 0x4, offset = 0x4, fixed_abs, tag = 'smem constant byte address 0x4 - core index']
  #allocation1 [shape = 'u32[144,128]{1,0:T(1,128)}', space=vmem, size = 0x12000, scoped, tag = 'internal scratch']
  %s0 = inlined_call_operand.vmem [shape: f32[160,8], index: 0, kind: input, shape index: {}]
  %s1 = inlined_call_operand.vmem [shape: f32[8,32], index: 1, kind: input, shape index: {}]
  %s2 = inlined_call_operand.vmem [shape: f32[1,32], index: 2, kind: input, shape index: {}]
  %s3 = inlined_call_operand.hbm [shape: f32[64,64], index: 3, kind: input, shape index: {}]
  %s4 = inlined_call_operand.vmem [shape: f32[1,64], index: 4, kind: input, shape index: {}]
  %s5 = inlined_call_operand.hbm [shape: f32[256,128], index: 5, kind: input, shape index: {}]
  %s6 = inlined_call_operand.vmem [shape: f32[1,128], index: 6, kind: input, shape index: {}]
  %s7 = inlined_call_operand.vmem [shape: f32[128,128], index: 7, kind: input, shape index: {}]
  %s8 = inlined_call_operand.vmem [shape: f32[1,128], index: 8, kind: input, shape index: {}]
  %s9 = inlined_call_operand.hbm [shape: f32[8,128], index: 9, kind: output, shape index: {}]
  %s10 = sld [smem:[#allocation0]]
  $region54: #{tpu_custom_call.1} parent=0
    _
  %s12 = ssub.s32 1, %s10
  %s13 = scalar_select 0, %s12, %s10
  $region1: #{tpu_custom_call.1} parent=0
    #allocation2 [shape = 'u8[32768]{0}', space=vmem, size = 0x8000, scoped, tag = 'input window, operand 3, single buffered']
    #allocation3 [shape = 's32[1]{0}', space=sflag, size = 0x4, scoped, tag = 'scoped memory for tpu_custom_call.1']
    #allocation4 [shape = 's32[1]{0}', space=sflag, size = 0x4, scoped, tag = 'scoped memory for tpu_custom_call.1']
    #allocation5 [shape = 'u8[131072]{0}', space=vmem, size = 0x20000, scoped, tag = 'input window, operand 5, single buffered']
    #allocation6 [shape = 's32[1]{0}', space=sflag, size = 0x4, scoped, tag = 'scoped memory for tpu_custom_call.1']
    #allocation7 [shape = 'u8[4096]{0}', space=vmem, size = 0x1000, scoped, tag = 'output window, operand 0, single buffered']
    %14 = vsyncpa [#allocation3], 0
    %15 = vsyncpa [#allocation6], 0
    %16 = vsyncpa [#allocation4], 0
    // Predicated region
    $region2: #{tpu_custom_call.1} parent=1 // pred_check
      _
    $region3: #{tpu_custom_call.1} parent=1 // pred_check_branch
      %18 = sbr.rel (0) target = $region5
    $region4: #{tpu_custom_call.1} parent=1 // pred_region
      _
    $region5: #{tpu_custom_call.1} parent=1 // pred_fallthru
      _
    // Predicated region
    $region6: #{tpu_custom_call.1} parent=1 // pred_check
      _
    $region7: #{tpu_custom_call.1} parent=1 // pred_check_branch
      %20 = sbr.rel (0) target = $region9
    $region8: #{tpu_custom_call.1} parent=1 // pred_region
      _
    $region9: #{tpu_custom_call.1} parent=1 // pred_fallthru
      _
    // Predicated region
    $region10: #{tpu_custom_call.1} parent=1 // pred_check
      _
    $region11: #{tpu_custom_call.1} parent=1 // pred_check_branch
      %22 = sbr.rel (0) target = $region13
    $region12: #{tpu_custom_call.1} parent=1 // pred_region
      _
    $region13: #{tpu_custom_call.1} parent=1 // pred_fallthru
      _
    // Predicated region
    $region14: #{tpu_custom_call.1} parent=1 // pred_check
      _
    $region15: #{tpu_custom_call.1} parent=1 // pred_check_branch
      %24 = sbr.rel (0) target = $region17
    $region16: #{tpu_custom_call.1} parent=1 // pred_region
      %s26 = ssub.s32 1024, 1024
      %27 = vsyncadd [#allocation3], %s26
      %s28 = sshll.u32 [#allocation2], 4
      %s29 = int_to_ptr.vmem [resolvable:$true] %s28
      %34 = dma.hbm_to_vmem [thread:$0]  %s3, 1024, %s29, [#allocation3], 128, 128, 8
    $region17: #{tpu_custom_call.1} parent=1 // pred_fallthru
      _
    // Predicated region
    $region18: #{tpu_custom_call.1} parent=1 // pred_check
      _
    $region19: #{tpu_custom_call.1} parent=1 // pred_check_branch
      %36 = sbr.rel (0) target = $region21
    $region20: #{tpu_custom_call.1} parent=1 // pred_region
      _
    $region21: #{tpu_custom_call.1} parent=1 // pred_fallthru
      _
    // Predicated region
    $region22: #{tpu_custom_call.1} parent=1 // pred_check
      _
    $region23: #{tpu_custom_call.1} parent=1 // pred_check_branch
      %38 = sbr.rel (0) target = $region25
    $region24: #{tpu_custom_call.1} parent=1 // pred_region
      %s40 = ssub.s32 4096, 4096
      %41 = vsyncadd [#allocation6], %s40
      %s42 = sshll.u32 [#allocation5], 4
      %s43 = int_to_ptr.vmem [resolvable:$true] %s42
      %48 = dma.hbm_to_vmem [thread:$0]  %s5, 4096, %s43, [#allocation6], 128, 128, 8
    $region25: #{tpu_custom_call.1} parent=1 // pred_fallthru
      _
    // Predicated region
    $region26: #{tpu_custom_call.1} parent=1 // pred_check
      _
    $region27: #{tpu_custom_call.1} parent=1 // pred_check_branch
      %50 = sbr.rel (0) target = $region29
    $region28: #{tpu_custom_call.1} parent=1 // pred_region
      _
    $region29: #{tpu_custom_call.1} parent=1 // pred_fallthru
      _
    // Predicated region
    $region30: #{tpu_custom_call.1} parent=1 // pred_check
      _
    $region31: #{tpu_custom_call.1} parent=1 // pred_check_branch
      %52 = sbr.rel (0) target = $region33
    $region32: #{tpu_custom_call.1} parent=1 // pred_region
      _
    $region33: #{tpu_custom_call.1} parent=1 // pred_fallthru
      _
    // Predicated region
    $region34: #{tpu_custom_call.1} parent=1 // pred_check
      _
    $region35: #{tpu_custom_call.1} parent=1 // pred_check_branch
      %54 = sbr.rel (0) target = $region37
    $region36: #{tpu_custom_call.1} parent=1 // pred_region
      _
    $region37: #{tpu_custom_call.1} parent=1 // pred_fallthru
      _
    // Predicated region
    $region38: #{tpu_custom_call.1} parent=1 // pred_check
      _
    $region39: #{tpu_custom_call.1} parent=1 // pred_check_branch
      %56 = sbr.rel (0) target = $region41
    $region40: #{tpu_custom_call.1} parent=1 // pred_region
      %57 = dma.done [#allocation3], 1024
    $region41: #{tpu_custom_call.1} parent=1 // pred_fallthru
      _
    // Predicated region
    $region42: #{tpu_custom_call.1} parent=1 // pred_check
      _
    $region43: #{tpu_custom_call.1} parent=1 // pred_check_branch
      %59 = sbr.rel (0) target = $region45
    $region44: #{tpu_custom_call.1} parent=1 // pred_region
      %60 = dma.done [#allocation6], 4096
    $region45: #{tpu_custom_call.1} parent=1 // pred_fallthru
      _
    %v61 = vld [vmem:[%s0] sm:$0xff]
    %v62 = vld [vmem:[%s0 + $0x8] sm:$0xff]
    %v63 = vld [vmem:[%s0 + $0x10] sm:$0xff]
    %v64 = vld [vmem:[%s0 + $0x18] sm:$0xff]
    %v65 = vld [vmem:[%s0 + $0x20] sm:$0xff]
    %v66 = vld [vmem:[%s0 + $0x28] sm:$0xff]
    %v67 = vld [vmem:[%s0 + $0x30] sm:$0xff]
    %v68 = vld [vmem:[%s0 + $0x38] sm:$0xff]
    %v69 = vld [vmem:[%s0 + $0x40] sm:$0xff]
    %v70 = vld [vmem:[%s0 + $0x48] sm:$0xff]
    %v71 = vld [vmem:[%s0 + $0x50] sm:$0xff]
    %v72 = vld [vmem:[%s0 + $0x58] sm:$0xff]
    %v73 = vld [vmem:[%s0 + $0x60] sm:$0xff]
    %v74 = vld [vmem:[%s0 + $0x68] sm:$0xff]
    %v75 = vld [vmem:[%s0 + $0x70] sm:$0xff]
    %v76 = vld [vmem:[%s0 + $0x78] sm:$0xff]
    %v77 = vld [vmem:[%s0 + $0x80] sm:$0xff]
    %v78 = vld [vmem:[%s0 + $0x88] sm:$0xff]
    %v79 = vld [vmem:[%s0 + $0x90] sm:$0xff]
    %v80 = vld [vmem:[%s0 + $0x98] sm:$0xff]
    %v81 = vld [vmem:[%s1] sm:$0xff]
    %v82 = vld [vmem:[%s2] sm:$0x1]
    %v84 = vlaneseq
    %v85 = vshrl.u32 %v84, 7
    %v86 = vsub.s32 0, %v85
    %v87 = vrot.slane %v82, %v86
    %vm89 = vcmask 64512
    %v91 = vsel %vm89, %v61, 0
    %v94 = vsel %vm89, %v62, 0
    %v97 = vsel %vm89, %v63, 0
    %v100 = vsel %vm89, %v64, 0
    %v103 = vsel %vm89, %v65, 0
    %v106 = vsel %vm89, %v66, 0
    %v109 = vsel %vm89, %v67, 0
    %v112 = vsel %vm89, %v68, 0
    %v115 = vsel %vm89, %v69, 0
    %v118 = vsel %vm89, %v70, 0
    %v121 = vsel %vm89, %v71, 0
    %v124 = vsel %vm89, %v72, 0
    %v127 = vsel %vm89, %v73, 0
    %v130 = vsel %vm89, %v74, 0
    %v133 = vsel %vm89, %v75, 0
    %v136 = vsel %vm89, %v76, 0
    %v139 = vsel %vm89, %v77, 0
    %v142 = vsel %vm89, %v78, 0
    %v145 = vsel %vm89, %v79, 0
    %v148 = vsel %vm89, %v80, 0
    %150 = vmatprep.subr.mxu0 0.0
    %151 = vmatpush1.msra.mxu0 0.0
    %152 = vmatprep.subr.mxu0 0.0
    %153 = vmatpush1.msra.mxu0 0.0
    %154 = vmatprep.subr.mxu0 0.0
    %155 = vmatpush1.msra.mxu0 0.0
    %156 = vmatprep.subr.mxu0 0.0
    %157 = vmatpush1.msra.mxu0 0.0
    %158 = vmatprep.subr.mxu0 0.0
    %159 = vmatpush1.msra.mxu0 0.0
    %160 = vmatprep.subr.mxu0 0.0
    %161 = vmatpush1.msra.mxu0 0.0
    %162 = vmatprep.subr.mxu0 0.0
    %163 = vmatpush1.msra.mxu0 0.0
    %164 = vmatprep.subr.mxu0 0.0
    %165 = vmatpush1.msra.mxu0 0.0
    %166 = vmatprep.subr.mxu0 0.0
    %167 = vmatpush1.msra.mxu0 0.0
    %168 = vmatprep.subr.mxu0 0.0
    %169 = vmatpush1.msra.mxu0 0.0
    %170 = vmatprep.subr.mxu0 0.0
    %171 = vmatpush1.msra.mxu0 0.0
    %172 = vmatprep.subr.mxu0 0.0
    %173 = vmatpush1.msra.mxu0 0.0
    %174 = vmatprep.subr.mxu0 0.0
    %175 = vmatpush1.msra.mxu0 0.0
    %176 = vmatprep.subr.mxu0 0.0
    %177 = vmatpush1.msra.mxu0 0.0
    %178 = vmatprep.subr.mxu0 0.0
    %179 = vmatpush1.msra.mxu0 0.0
    %180 = vmatprep.subr.mxu0 0.0
    %181 = vmatpush1.msra.mxu0 %v81
    %182 = vmatprep.subr.mxu0 0.0
    %183 = vmatpush2.msra.mxu0 0.0
    %184 = vmatprep.subr.mxu0 0.0
    %185 = vmatpush2.msra.mxu0 0.0
    %186 = vmatprep.subr.mxu0 0.0
    %187 = vmatpush2.msra.mxu0 0.0
    %188 = vmatprep.subr.mxu0 0.0
    %189 = vmatpush2.msra.mxu0 0.0
    %190 = vmatprep.subr.mxu0 0.0
    %191 = vmatpush2.msra.mxu0 0.0
    %192 = vmatprep.subr.mxu0 0.0
    %193 = vmatpush2.msra.mxu0 0.0
    %194 = vmatprep.subr.mxu0 0.0
    %195 = vmatpush2.msra.mxu0 0.0
    %196 = vmatprep.subr.mxu0 0.0
    %197 = vmatpush2.msra.mxu0 0.0
    %198 = vmatprep.subr.mxu0 0.0
    %199 = vmatpush2.msra.mxu0 0.0
    %200 = vmatprep.subr.mxu0 0.0
    %201 = vmatpush2.msra.mxu0 0.0
    %202 = vmatprep.subr.mxu0 0.0
    %203 = vmatpush2.msra.mxu0 0.0
    %204 = vmatprep.subr.mxu0 0.0
    %205 = vmatpush2.msra.mxu0 0.0
    %206 = vmatprep.subr.mxu0 0.0
    %207 = vmatpush2.msra.mxu0 0.0
    %208 = vmatprep.subr.mxu0 0.0
    %209 = vmatpush2.msra.mxu0 0.0
    %210 = vmatprep.subr.mxu0 0.0
    %211 = vmatpush2.msra.mxu0 0.0
    %212 = vmatprep.subr.mxu0 0.0
    %213 = vmatpush2.msra.mxu0 0.0
    %214 = vmatprep.mubr.f32.mxu0 0.0
    %215 = vmatmul.mubr.f32.gmra.mxu0 %v91
    %v216 = vpop.f32.mrf.mxu0
    %v217 = vadd.f32 %v87, %v216
    %v218 = vpop.f32.mrf.mxu0
    %219 = vmatprep.mubr.f32.mxu0 0.0
    %220 = vmatmul.mubr.f32.gmra.mxu0 %v94
    %v221 = vpop.f32.mrf.mxu0
    %v222 = vadd.f32 %v87, %v221
    %v223 = vpop.f32.mrf.mxu0
    %224 = vmatprep.mubr.f32.mxu0 0.0
    %225 = vmatmul.mubr.f32.gmra.mxu0 %v97
    %v226 = vpop.f32.mrf.mxu0
    %v227 = vadd.f32 %v87, %v226
    %v228 = vpop.f32.mrf.mxu0
    %229 = vmatprep.mubr.f32.mxu0 0.0
    %230 = vmatmul.mubr.f32.gmra.mxu0 %v100
    %v231 = vpop.f32.mrf.mxu0
    %v232 = vadd.f32 %v87, %v231
    %v233 = vpop.f32.mrf.mxu0
    %234 = vmatprep.mubr.f32.mxu0 0.0
    %235 = vmatmul.mubr.f32.gmra.mxu0 %v103
    %v236 = vpop.f32.mrf.mxu0
    %v237 = vadd.f32 %v87, %v236
    %v238 = vpop.f32.mrf.mxu0
    %239 = vmatprep.mubr.f32.mxu0 0.0
    %240 = vmatmul.mubr.f32.gmra.mxu0 %v106
    %v241 = vpop.f32.mrf.mxu0
    %v242 = vadd.f32 %v87, %v241
    %v243 = vpop.f32.mrf.mxu0
    %244 = vmatprep.mubr.f32.mxu0 0.0
    %245 = vmatmul.mubr.f32.gmra.mxu0 %v109
    %v246 = vpop.f32.mrf.mxu0
    %v247 = vadd.f32 %v87, %v246
    %v248 = vpop.f32.mrf.mxu0
    %249 = vmatprep.mubr.f32.mxu0 0.0
    %250 = vmatmul.mubr.f32.gmra.mxu0 %v112
    %v251 = vpop.f32.mrf.mxu0
    %v252 = vadd.f32 %v87, %v251
    %v253 = vpop.f32.mrf.mxu0
    %254 = vmatprep.mubr.f32.mxu0 0.0
    %255 = vmatmul.mubr.f32.gmra.mxu0 %v115
    %v256 = vpop.f32.mrf.mxu0
    %v257 = vadd.f32 %v87, %v256
    %v258 = vpop.f32.mrf.mxu0
    %259 = vmatprep.mubr.f32.mxu0 0.0
    %260 = vmatmul.mubr.f32.gmra.mxu0 %v118
    %v261 = vpop.f32.mrf.mxu0
    %v262 = vpop.f32.mrf.mxu0
    %263 = vmatprep.mubr.f32.mxu0 0.0
    %264 = vmatmul.mubr.f32.gmra.mxu0 %v121
    %v265 = vpop.f32.mrf.mxu0
    %v266 = vadd.f32 %v87, %v265
    %v267 = vpop.f32.mrf.mxu0
    %268 = vmatprep.mubr.f32.mxu0 0.0
    %269 = vmatmul.mubr.f32.gmra.mxu0 %v124
    %v270 = vpop.f32.mrf.mxu0
    %v271 = vadd.f32 %v87, %v270
    %v272 = vpop.f32.mrf.mxu0
    %273 = vmatprep.mubr.f32.mxu0 0.0
    %274 = vmatmul.mubr.f32.gmra.mxu0 %v127
    %v275 = vpop.f32.mrf.mxu0
    %v276 = vadd.f32 %v87, %v275
    %v277 = vpop.f32.mrf.mxu0
    %278 = vmatprep.mubr.f32.mxu0 0.0
    %279 = vmatmul.mubr.f32.gmra.mxu0 %v130
    %v280 = vpop.f32.mrf.mxu0
    %v281 = vadd.f32 %v87, %v280
    %v282 = vpop.f32.mrf.mxu0
    %283 = vmatprep.mubr.f32.mxu0 0.0
    %284 = vmatmul.mubr.f32.gmra.mxu0 %v133
    %v285 = vpop.f32.mrf.mxu0
    %v286 = vadd.f32 %v87, %v285
    %v287 = vpop.f32.mrf.mxu0
    %288 = vmatprep.mubr.f32.mxu0 0.0
    %289 = vmatmul.mubr.f32.gmra.mxu0 %v136
    %v290 = vpop.f32.mrf.mxu0
    %v291 = vadd.f32 %v87, %v290
    %v292 = vpop.f32.mrf.mxu0
    %293 = vmatprep.mubr.f32.mxu0 0.0
    %294 = vmatmul.mubr.f32.gmra.mxu0 %v139
    %v295 = vpop.f32.mrf.mxu0
    %v296 = vadd.f32 %v87, %v295
    %v297 = vpop.f32.mrf.mxu0
    %298 = vmatprep.mubr.f32.mxu0 0.0
    %299 = vmatmul.mubr.f32.gmra.mxu0 %v142
    %v300 = vpop.f32.mrf.mxu0
    %v301 = vadd.f32 %v87, %v300
    %v302 = vpop.f32.mrf.mxu0
    %303 = vmatprep.mubr.f32.mxu0 0.0
    %304 = vmatmul.mubr.f32.gmra.mxu0 %v145
    %v305 = vpop.f32.mrf.mxu0
    %v306 = vadd.f32 %v87, %v305
    %v307 = vpop.f32.mrf.mxu0
    %308 = vmatprep.mubr.f32.mxu0 0.0
    %309 = vmatmul.mubr.f32.gmra.mxu0 %v148
    %v310 = vpop.f32.mrf.mxu0
    %v311 = vpop.f32.mrf.mxu0
    %312 = vdwg.mxu0
    %v313 = vmax.f32 %v217, 0.0
    %v314 = vmax.f32 %v222, 0.0
    %v315 = vmax.f32 %v227, 0.0
    %v316 = vmax.f32 %v232, 0.0
    %v317 = vmax.f32 %v237, 0.0
    %v318 = vmax.f32 %v242, 0.0
    %v319 = vmax.f32 %v247, 0.0
    %v320 = vmax.f32 %v252, 0.0
    %v321 = vmax.f32 %v257, 0.0
    %v322 = vmax.f32 %v266, 0.0
    %v323 = vmax.f32 %v271, 0.0
    %v324 = vmax.f32 %v276, 0.0
    %v325 = vmax.f32 %v281, 0.0
    %v326 = vmax.f32 %v286, 0.0
    %v327 = vmax.f32 %v291, 0.0
    %v328 = vmax.f32 %v296, 0.0
    %v329 = vmax.f32 %v301, 0.0
    %v330 = vmax.f32 %v306, 0.0
    %v331 = vmax.f32 %v313, %v322
    %v332 = vmax.f32 %v314, %v323
    %v333 = vmax.f32 %v315, %v324
    %v334 = vmax.f32 %v316, %v325
    %v335 = vmax.f32 %v317, %v326
    %v336 = vmax.f32 %v318, %v327
    %v337 = vmax.f32 %v319, %v328
    %v338 = vmax.f32 %v320, %v329
    %v339 = vmax.f32 %v321, %v330
    %348 = vrot.lane.b32.xlu0 %v336, 32
    %v349 = vpop.permute.xlu0 %348
    %350 = vrot.lane.b32.xlu0 %v337, 32
    %v351 = vpop.permute.xlu0 %350
    %352 = vrot.lane.b32.xlu0 %v338, 32
    %v353 = vpop.permute.xlu0 %352
    %354 = vrot.lane.b32.xlu0 %v339, 32
    %v355 = vpop.permute.xlu0 %354
    %356 = vrot.lane.b32.xlu0 %v332, 32
    %v357 = vpop.permute.xlu0 %356
    %358 = vrot.lane.b32.xlu0 %v333, 32
    %v359 = vpop.permute.xlu0 %358
    %360 = vrot.lane.b32.xlu0 %v334, 32
    %v361 = vpop.permute.xlu0 %360
    %362 = vrot.lane.b32.xlu0 %v335, 32
    %v363 = vpop.permute.xlu0 %362
    %vm372 = vcmask 261120
    %v373 = vsel %vm372, %v331, %v349
    %v374 = vsel %vm372, %v332, %v351
    %v375 = vsel %vm372, %v333, %v353
    %v376 = vsel %vm372, %v334, %v355
    %v377 = vsel %vm372, %v336, %v357
    %v378 = vsel %vm372, %v337, %v359
    %v379 = vsel %vm372, %v338, %v361
    %v380 = vsel %vm372, %v339, %v363
    %v381 = vld [vmem:[#allocation2] sm:$0xff]
    %v382 = vld [vmem:[#allocation2 + $0x8] sm:$0xff]
    %v383 = vld [vmem:[#allocation2 + $0x10] sm:$0xff]
    %v384 = vld [vmem:[#allocation2 + $0x18] sm:$0xff]
    %v385 = vld [vmem:[#allocation2 + $0x20] sm:$0xff]
    %v386 = vld [vmem:[#allocation2 + $0x28] sm:$0xff]
    %v387 = vld [vmem:[#allocation2 + $0x30] sm:$0xff]
    %v388 = vld [vmem:[#allocation2 + $0x38] sm:$0xff]
    %v389 = vld [vmem:[%s4] sm:$0x1]
    %v391 = vlaneseq
    %v392 = vshrl.u32 %v391, 7
    %v393 = vsub.s32 0, %v392
    %v394 = vrot.slane %v389, %v393
    %vm396 = vcmask 523264
    %v398 = vsel %vm396, %v373, 0
    %v401 = vsel %vm396, %v374, 0
    %v404 = vsel %vm396, %v375, 0
    %v407 = vsel %vm396, %v376, 0
    %v410 = vsel %vm396, %v377, 0
    %v413 = vsel %vm396, %v378, 0
    %v416 = vsel %vm396, %v379, 0
    %v419 = vsel %vm396, %v380, 0
    %421 = vmatprep.subr.mxu0 0.0
    %422 = vmatpush1.msra.mxu0 0.0
    %423 = vmatprep.subr.mxu0 0.0
    %424 = vmatpush1.msra.mxu0 0.0
    %425 = vmatprep.subr.mxu0 0.0
    %426 = vmatpush1.msra.mxu0 0.0
    %427 = vmatprep.subr.mxu0 0.0
    %428 = vmatpush1.msra.mxu0 0.0
    %429 = vmatprep.subr.mxu0 0.0
    %430 = vmatpush1.msra.mxu0 0.0
    %431 = vmatprep.subr.mxu0 0.0
    %432 = vmatpush1.msra.mxu0 0.0
    %433 = vmatprep.subr.mxu0 0.0
    %434 = vmatpush1.msra.mxu0 0.0
    %435 = vmatprep.subr.mxu0 0.0
    %436 = vmatpush1.msra.mxu0 0.0
    %437 = vmatprep.subr.mxu0 0.0
    %438 = vmatpush1.msra.mxu0 %v388
    %439 = vmatprep.subr.mxu0 0.0
    %440 = vmatpush1.msra.mxu0 %v387
    %441 = vmatprep.subr.mxu0 0.0
    %442 = vmatpush1.msra.mxu0 %v386
    %443 = vmatprep.subr.mxu0 0.0
    %444 = vmatpush1.msra.mxu0 %v385
    %445 = vmatprep.subr.mxu0 0.0
    %446 = vmatpush1.msra.mxu0 %v384
    %447 = vmatprep.subr.mxu0 0.0
    %448 = vmatpush1.msra.mxu0 %v383
    %449 = vmatprep.subr.mxu0 0.0
    %450 = vmatpush1.msra.mxu0 %v382
    %451 = vmatprep.subr.mxu0 0.0
    %452 = vmatpush1.msra.mxu0 %v381
    %453 = vmatprep.subr.mxu0 0.0
    %454 = vmatpush2.msra.mxu0 0.0
    %455 = vmatprep.subr.mxu0 0.0
    %456 = vmatpush2.msra.mxu0 0.0
    %457 = vmatprep.subr.mxu0 0.0
    %458 = vmatpush2.msra.mxu0 0.0
    %459 = vmatprep.subr.mxu0 0.0
    %460 = vmatpush2.msra.mxu0 0.0
    %461 = vmatprep.subr.mxu0 0.0
    %462 = vmatpush2.msra.mxu0 0.0
    %463 = vmatprep.subr.mxu0 0.0
    %464 = vmatpush2.msra.mxu0 0.0
    %465 = vmatprep.subr.mxu0 0.0
    %466 = vmatpush2.msra.mxu0 0.0
    %467 = vmatprep.subr.mxu0 0.0
    %468 = vmatpush2.msra.mxu0 0.0
    %469 = vmatprep.subr.mxu0 0.0
    %470 = vmatpush2.msra.mxu0 0.0
    %471 = vmatprep.subr.mxu0 0.0
    %472 = vmatpush2.msra.mxu0 0.0
    %473 = vmatprep.subr.mxu0 0.0
    %474 = vmatpush2.msra.mxu0 0.0
    %475 = vmatprep.subr.mxu0 0.0
    %476 = vmatpush2.msra.mxu0 0.0
    %477 = vmatprep.subr.mxu0 0.0
    %478 = vmatpush2.msra.mxu0 0.0
    %479 = vmatprep.subr.mxu0 0.0
    %480 = vmatpush2.msra.mxu0 0.0
    %481 = vmatprep.subr.mxu0 0.0
    %482 = vmatpush2.msra.mxu0 0.0
    %483 = vmatprep.subr.mxu0 0.0
    %484 = vmatpush2.msra.mxu0 0.0
    %485 = vmatprep.mubr.f32.mxu0 0.0
    %486 = vmatmul.mubr.f32.gmra.mxu0 %v398
    %v487 = vpop.f32.mrf.mxu0
    %v488 = vadd.f32 %v394, %v487
    %v489 = vpop.f32.mrf.mxu0
    %490 = vmatprep.mubr.f32.mxu0 0.0
    %491 = vmatmul.mubr.f32.gmra.mxu0 %v401
    %v492 = vpop.f32.mrf.mxu0
    %v493 = vadd.f32 %v394, %v492
    %v494 = vpop.f32.mrf.mxu0
    %495 = vmatprep.mubr.f32.mxu0 0.0
    %496 = vmatmul.mubr.f32.gmra.mxu0 %v404
    %v497 = vpop.f32.mrf.mxu0
    %v498 = vadd.f32 %v394, %v497
    %v499 = vpop.f32.mrf.mxu0
    %500 = vmatprep.mubr.f32.mxu0 0.0
    %501 = vmatmul.mubr.f32.gmra.mxu0 %v407
    %v502 = vpop.f32.mrf.mxu0
    %v503 = vadd.f32 %v394, %v502
    %v504 = vpop.f32.mrf.mxu0
    %505 = vmatprep.mubr.f32.mxu0 0.0
    %506 = vmatmul.mubr.f32.gmra.mxu0 %v410
    %v507 = vpop.f32.mrf.mxu0
    %v508 = vadd.f32 %v394, %v507
    %v509 = vpop.f32.mrf.mxu0
    %510 = vmatprep.mubr.f32.mxu0 0.0
    %511 = vmatmul.mubr.f32.gmra.mxu0 %v413
    %v512 = vpop.f32.mrf.mxu0
    %v513 = vadd.f32 %v394, %v512
    %v514 = vpop.f32.mrf.mxu0
    %515 = vmatprep.mubr.f32.mxu0 0.0
    %516 = vmatmul.mubr.f32.gmra.mxu0 %v416
    %v517 = vpop.f32.mrf.mxu0
    %v518 = vadd.f32 %v394, %v517
    %v519 = vpop.f32.mrf.mxu0
    %520 = vmatprep.mubr.f32.mxu0 0.0
    %521 = vmatmul.mubr.f32.gmra.mxu0 %v419
    %v522 = vpop.f32.mrf.mxu0
    %v523 = vadd.f32 %v394, %v522
    %v524 = vpop.f32.mrf.mxu0
    %525 = vdwg.mxu0
    %v526 = vmax.f32 %v488, 0.0
    %v527 = vmax.f32 %v493, 0.0
    %v528 = vmax.f32 %v498, 0.0
    %v529 = vmax.f32 %v503, 0.0
    %v530 = vmax.f32 %v508, 0.0
    %v531 = vmax.f32 %v513, 0.0
    %v532 = vmax.f32 %v518, 0.0
    %v533 = vmax.f32 %v523, 0.0
    %v534 = vmax.f32 %v526, %v530
    %v535 = vmax.f32 %v527, %v531
    %v536 = vmax.f32 %v528, %v532
    %v537 = vmax.f32 %v529, %v533
    %539 = vrot.lane.b32.xlu0 %v535, 64
    %v540 = vpop.permute.xlu0 %539
    %543 = vrot.lane.b32.xlu0 %v537, 64
    %v544 = vpop.permute.xlu0 %543
    %v546 = vsel %vm396, %v534, %v540
    %v547 = vsel %vm396, %v536, %v544
    %v548 = vld [vmem:[#allocation5] sm:$0xff]
    %v549 = vld [vmem:[#allocation5 + $0x8] sm:$0xff]
    %v550 = vld [vmem:[#allocation5 + $0x10] sm:$0xff]
    %v551 = vld [vmem:[#allocation5 + $0x18] sm:$0xff]
    %v552 = vld [vmem:[#allocation5 + $0x20] sm:$0xff]
    %v553 = vld [vmem:[#allocation5 + $0x28] sm:$0xff]
    %v554 = vld [vmem:[#allocation5 + $0x30] sm:$0xff]
    %v555 = vld [vmem:[#allocation5 + $0x38] sm:$0xff]
    %v556 = vld [vmem:[#allocation5 + $0x40] sm:$0xff]
    %v557 = vld [vmem:[#allocation5 + $0x48] sm:$0xff]
    %v558 = vld [vmem:[#allocation5 + $0x50] sm:$0xff]
    %v559 = vld [vmem:[#allocation5 + $0x58] sm:$0xff]
    %v560 = vld [vmem:[#allocation5 + $0x60] sm:$0xff]
    %v561 = vld [vmem:[#allocation5 + $0x68] sm:$0xff]
    %v562 = vld [vmem:[#allocation5 + $0x70] sm:$0xff]
    %v563 = vld [vmem:[#allocation5 + $0x78] sm:$0xff]
    %v564 = vld [vmem:[#allocation5 + $0x80] sm:$0xff]
    %v565 = vld [vmem:[#allocation5 + $0x88] sm:$0xff]
    %v566 = vld [vmem:[#allocation5 + $0x90] sm:$0xff]
    %v567 = vld [vmem:[#allocation5 + $0x98] sm:$0xff]
    %v568 = vld [vmem:[#allocation5 + $0xa0] sm:$0xff]
    %v569 = vld [vmem:[#allocation5 + $0xa8] sm:$0xff]
    %v570 = vld [vmem:[#allocation5 + $0xb0] sm:$0xff]
    %v571 = vld [vmem:[#allocation5 + $0xb8] sm:$0xff]
    %v572 = vld [vmem:[#allocation5 + $0xc0] sm:$0xff]
    %v573 = vld [vmem:[#allocation5 + $0xc8] sm:$0xff]
    %v574 = vld [vmem:[#allocation5 + $0xd0] sm:$0xff]
    %v575 = vld [vmem:[#allocation5 + $0xd8] sm:$0xff]
    %v576 = vld [vmem:[#allocation5 + $0xe0] sm:$0xff]
    %v577 = vld [vmem:[#allocation5 + $0xe8] sm:$0xff]
    %v578 = vld [vmem:[#allocation5 + $0xf0] sm:$0xff]
    %v579 = vld [vmem:[#allocation5 + $0xf8] sm:$0xff]
    %v580 = vld [vmem:[%s6] sm:$0x1]
    %v582 = vlaneseq
    %v583 = vshrl.u32 %v582, 7
    %v584 = vsub.s32 0, %v583
    %v585 = vrot.slane %v580, %v584
    %587 = vmatprep.subr.mxu0 0.0
    %588 = vmatpush1.msra.mxu0 %v563
    %589 = vmatprep.subr.mxu0 0.0
    %590 = vmatpush1.msra.mxu0 %v562
    %591 = vmatprep.subr.mxu0 0.0
    %592 = vmatpush1.msra.mxu0 %v561
    %593 = vmatprep.subr.mxu0 0.0
    %594 = vmatpush1.msra.mxu0 %v560
    %595 = vmatprep.subr.mxu0 0.0
    %596 = vmatpush1.msra.mxu0 %v559
    %597 = vmatprep.subr.mxu0 0.0
    %598 = vmatpush1.msra.mxu0 %v558
    %599 = vmatprep.subr.mxu0 0.0
    %600 = vmatpush1.msra.mxu0 %v557
    %601 = vmatprep.subr.mxu0 0.0
    %602 = vmatpush1.msra.mxu0 %v556
    %603 = vmatprep.subr.mxu0 0.0
    %604 = vmatpush1.msra.mxu0 %v555
    %605 = vmatprep.subr.mxu0 0.0
    %606 = vmatpush1.msra.mxu0 %v554
    %607 = vmatprep.subr.mxu0 0.0
    %608 = vmatpush1.msra.mxu0 %v553
    %609 = vmatprep.subr.mxu0 0.0
    %610 = vmatpush1.msra.mxu0 %v552
    %611 = vmatprep.subr.mxu0 0.0
    %612 = vmatpush1.msra.mxu0 %v551
    %613 = vmatprep.subr.mxu0 0.0
    %614 = vmatpush1.msra.mxu0 %v550
    %615 = vmatprep.subr.mxu0 0.0
    %616 = vmatpush1.msra.mxu0 %v549
    %617 = vmatprep.subr.mxu0 0.0
    %618 = vmatpush1.msra.mxu0 %v548
    %619 = vmatprep.subr.mxu0 0.0
    %620 = vmatpush2.msra.mxu0 %v579
    %621 = vmatprep.subr.mxu0 0.0
    %622 = vmatpush2.msra.mxu0 %v578
    %623 = vmatprep.subr.mxu0 0.0
    %624 = vmatpush2.msra.mxu0 %v577
    %625 = vmatprep.subr.mxu0 0.0
    %626 = vmatpush2.msra.mxu0 %v576
    %627 = vmatprep.subr.mxu0 0.0
    %628 = vmatpush2.msra.mxu0 %v575
    %629 = vmatprep.subr.mxu0 0.0
    %630 = vmatpush2.msra.mxu0 %v574
    %631 = vmatprep.subr.mxu0 0.0
    %632 = vmatpush2.msra.mxu0 %v573
    %633 = vmatprep.subr.mxu0 0.0
    %634 = vmatpush2.msra.mxu0 %v572
    %635 = vmatprep.subr.mxu0 0.0
    %636 = vmatpush2.msra.mxu0 %v571
    %637 = vmatprep.subr.mxu0 0.0
    %638 = vmatpush2.msra.mxu0 %v570
    %639 = vmatprep.subr.mxu0 0.0
    %640 = vmatpush2.msra.mxu0 %v569
    %641 = vmatprep.subr.mxu0 0.0
    %642 = vmatpush2.msra.mxu0 %v568
    %643 = vmatprep.subr.mxu0 0.0
    %644 = vmatpush2.msra.mxu0 %v567
    %645 = vmatprep.subr.mxu0 0.0
    %646 = vmatpush2.msra.mxu0 %v566
    %647 = vmatprep.subr.mxu0 0.0
    %648 = vmatpush2.msra.mxu0 %v565
    %649 = vmatprep.subr.mxu0 0.0
    %650 = vmatpush2.msra.mxu0 %v564
    %651 = vmatprep.mubr.f32.mxu0 %v547
    %652 = vmatmul.mubr.f32.gmra.mxu0 %v546
    %v653 = vpop.f32.mrf.mxu0
    %v654 = vadd.f32 %v585, %v653
    %v655 = vpop.f32.mrf.mxu0
    %656 = vdwg.mxu0
    %v657 = vmax.f32 %v654, 0.0
    %v658 = vld [vmem:[%s7] sm:$0xff]
    %v659 = vld [vmem:[%s7 + $0x8] sm:$0xff]
    %v660 = vld [vmem:[%s7 + $0x10] sm:$0xff]
    %v661 = vld [vmem:[%s7 + $0x18] sm:$0xff]
    %v662 = vld [vmem:[%s7 + $0x20] sm:$0xff]
    %v663 = vld [vmem:[%s7 + $0x28] sm:$0xff]
    %v664 = vld [vmem:[%s7 + $0x30] sm:$0xff]
    %v665 = vld [vmem:[%s7 + $0x38] sm:$0xff]
    %v666 = vld [vmem:[%s7 + $0x40] sm:$0xff]
    %v667 = vld [vmem:[%s7 + $0x48] sm:$0xff]
    %v668 = vld [vmem:[%s7 + $0x50] sm:$0xff]
    %v669 = vld [vmem:[%s7 + $0x58] sm:$0xff]
    %v670 = vld [vmem:[%s7 + $0x60] sm:$0xff]
    %v671 = vld [vmem:[%s7 + $0x68] sm:$0xff]
    %v672 = vld [vmem:[%s7 + $0x70] sm:$0xff]
    %v673 = vld [vmem:[%s7 + $0x78] sm:$0xff]
    %v674 = vld [vmem:[%s8] sm:$0x1]
    %v676 = vlaneseq
    %v677 = vshrl.u32 %v676, 7
    %v678 = vsub.s32 0, %v677
    %v679 = vrot.slane %v674, %v678
    %681 = vmatprep.subr.mxu0 0.0
    %682 = vmatpush1.msra.mxu0 %v673
    %683 = vmatprep.subr.mxu0 0.0
    %684 = vmatpush1.msra.mxu0 %v672
    %685 = vmatprep.subr.mxu0 0.0
    %686 = vmatpush1.msra.mxu0 %v671
    %687 = vmatprep.subr.mxu0 0.0
    %688 = vmatpush1.msra.mxu0 %v670
    %689 = vmatprep.subr.mxu0 0.0
    %690 = vmatpush1.msra.mxu0 %v669
    %691 = vmatprep.subr.mxu0 0.0
    %692 = vmatpush1.msra.mxu0 %v668
    %693 = vmatprep.subr.mxu0 0.0
    %694 = vmatpush1.msra.mxu0 %v667
    %695 = vmatprep.subr.mxu0 0.0
    %696 = vmatpush1.msra.mxu0 %v666
    %697 = vmatprep.subr.mxu0 0.0
    %698 = vmatpush1.msra.mxu0 %v665
    %699 = vmatprep.subr.mxu0 0.0
    %700 = vmatpush1.msra.mxu0 %v664
    %701 = vmatprep.subr.mxu0 0.0
    %702 = vmatpush1.msra.mxu0 %v663
    %703 = vmatprep.subr.mxu0 0.0
    %704 = vmatpush1.msra.mxu0 %v662
    %705 = vmatprep.subr.mxu0 0.0
    %706 = vmatpush1.msra.mxu0 %v661
    %707 = vmatprep.subr.mxu0 0.0
    %708 = vmatpush1.msra.mxu0 %v660
    %709 = vmatprep.subr.mxu0 0.0
    %710 = vmatpush1.msra.mxu0 %v659
    %711 = vmatprep.subr.mxu0 0.0
    %712 = vmatpush1.msra.mxu0 %v658
    %713 = vmatprep.subr.mxu0 0.0
    %714 = vmatpush2.msra.mxu0 0.0
    %715 = vmatprep.subr.mxu0 0.0
    %716 = vmatpush2.msra.mxu0 0.0
    %717 = vmatprep.subr.mxu0 0.0
    %718 = vmatpush2.msra.mxu0 0.0
    %719 = vmatprep.subr.mxu0 0.0
    %720 = vmatpush2.msra.mxu0 0.0
    %721 = vmatprep.subr.mxu0 0.0
    %722 = vmatpush2.msra.mxu0 0.0
    %723 = vmatprep.subr.mxu0 0.0
    %724 = vmatpush2.msra.mxu0 0.0
    %725 = vmatprep.subr.mxu0 0.0
    %726 = vmatpush2.msra.mxu0 0.0
    %727 = vmatprep.subr.mxu0 0.0
    %728 = vmatpush2.msra.mxu0 0.0
    %729 = vmatprep.subr.mxu0 0.0
    %730 = vmatpush2.msra.mxu0 0.0
    %731 = vmatprep.subr.mxu0 0.0
    %732 = vmatpush2.msra.mxu0 0.0
    %733 = vmatprep.subr.mxu0 0.0
    %734 = vmatpush2.msra.mxu0 0.0
    %735 = vmatprep.subr.mxu0 0.0
    %736 = vmatpush2.msra.mxu0 0.0
    %737 = vmatprep.subr.mxu0 0.0
    %738 = vmatpush2.msra.mxu0 0.0
    %739 = vmatprep.subr.mxu0 0.0
    %740 = vmatpush2.msra.mxu0 0.0
    %741 = vmatprep.subr.mxu0 0.0
    %742 = vmatpush2.msra.mxu0 0.0
    %743 = vmatprep.subr.mxu0 0.0
    %744 = vmatpush2.msra.mxu0 0.0
    %745 = vmatprep.mubr.f32.mxu0 0.0
    %746 = vmatmul.mubr.f32.gmra.mxu0 %v657
    %v747 = vpop.f32.mrf.mxu0
    %v748 = vadd.f32 %v679, %v747
    %v749 = vpop.f32.mrf.mxu0
    %750 = vdwg.mxu0
    %751 = vst [vmem:[#allocation7] sm:$0xff] %v748
    // Predicated region
    $region46: #{tpu_custom_call.1} parent=1 // pred_check
      _
    $region47: #{tpu_custom_call.1} parent=1 // pred_check_branch
      %753 = sbr.rel (0) target = $region49
    $region48: #{tpu_custom_call.1} parent=1 // pred_region
      %s755 = ssub.s32 128, 128
      %756 = vsyncadd [#allocation4], %s755
      %s758 = sshll.u32 [#allocation7], 4
      %s759 = int_to_ptr.vmem [resolvable:$true] %s758
      %761 = dma.vmem_to_hbm [thread:$0]  %s759, 128, %s9, [#allocation4]
    $region49: #{tpu_custom_call.1} parent=1 // pred_fallthru
      _
    // Predicated region
    $region50: #{tpu_custom_call.1} parent=1 // pred_check
      _
    $region51: #{tpu_custom_call.1} parent=1 // pred_check_branch
      %763 = sbr.rel (0) target = $region53
    $region52: #{tpu_custom_call.1} parent=1 // pred_region
      %764 = dma.done [#allocation4], 128
    $region53: #{tpu_custom_call.1} parent=1 // pred_fallthru
      _
    %765 = vsyncpa [#allocation3], 1
    %766 = vsyncpa [#allocation6], 1
    %767 = vsyncpa [#allocation4], 1

</llo_original>
